<compile_context>
chip_gen: v5e
topology: v5e:2x2
jax: 0.10.0
libtpu: 0.0.40
codegen_flags: <defaults>
</compile_context>

<pallas_src>
import jax
import jax.numpy as jnp
from jax.experimental import pallas as pl
from jax.experimental.pallas import tpu as pltpu


def _round_up(x, m):
    return ((x + m - 1) // m) * m


def critic_kernel(x_ref, w1_ref, b1_ref, w2_ref, b2_ref, w3_ref, b3_ref, q_ref):
    """One batch tile of the critic forward pass. x = [state | action]."""
    # fc1: single K=(input_dims + n_actions) contraction (concat fused in wrapper).
    h1 = jnp.dot(x_ref[...], w1_ref[...], preferred_element_type=jnp.float32)
    h1 = jnp.maximum(h1 + b1_ref[...], 0.0)
    # fc2 (MXU, f32 accumulate).
    h2 = jnp.dot(h1.astype(w2_ref.dtype), w2_ref[...],
                 preferred_element_type=jnp.float32)
    h2 = jnp.maximum(h2 + b2_ref[...], 0.0)
    # fc_q (out_features == 1): VPU multiply + lane reduction; relayout the (tm,)
    # column of per-row sums into a lane-dense (1, tm) row (XLU has slack).
    q = jnp.sum(h2 * w3_ref[...], axis=-1)                # (tm,)
    q_row = q.reshape(1, -1) + b3_ref[...]                 # (1, tm)
    q_ref[...] = q_row.astype(q_ref.dtype)


def critic_forward(state, action, params, *, block_batch=2048,
                   compute_dtype=jnp.float32):
    """state: (B, input_dims), action: (B, n_actions) -> q: (B, 1)."""
    w1, b1, w2, b2, w3, b3 = params
    B = state.shape[0]
    K = state.shape[1] + action.shape[1]
    fc1_dims = w1.shape[1]
    fc2_dims = w2.shape[1]

    # Fuse the torch.cat once in the wrapper -> one input slab, one fc1 MXU pass.
    x = jnp.concatenate([state, action], axis=1).astype(compute_dtype)
    w1c = w1.astype(compute_dtype)
    w2c = w2.astype(compute_dtype)
    b1f = b1.astype(jnp.float32)
    b2f = b2.astype(jnp.float32)
    w3f = w3.astype(jnp.float32)
    b3f = b3.astype(jnp.float32)

    # Batch tile: big tiles amortize the ~0.35us per-grid-step overhead; multiples
    # of 128 keep the lane-dense (1, tm) output block legal for any B and satisfy
    # bf16 sublane packing (16) automatically.
    block_batch = max(128, (block_batch // 128) * 128)
    tm = min(block_batch, _round_up(B, 128))
    if pl.cdiv(B, tm) == 1 and B > 128:
        # v7x has 2 TensorCores; >=2 "parallel" grid steps lets them share the batch.
        tm = _round_up(pl.cdiv(B, 2), 128)
    grid = (pl.cdiv(B, tm),)

    # TODO(synk): pipeline_mode=pl.Buffered(1) on the constant-index weight specs
    # would halve their VMEM footprint (only matters near v7x's ceiling at tm=4096).
    in_specs = [
        pl.BlockSpec((tm, K), lambda i: (i, 0)),               # fused [state|action]
        pl.BlockSpec((K, fc1_dims), lambda i: (0, 0)),         # W1 (VMEM resident)
        pl.BlockSpec((1, fc1_dims), lambda i: (0, 0)),         # b1
        pl.BlockSpec((fc1_dims, fc2_dims), lambda i: (0, 0)),  # W2 (VMEM resident)
        pl.BlockSpec((1, fc2_dims), lambda i: (0, 0)),         # b2
        pl.BlockSpec((1, fc2_dims), lambda i: (0, 0)),         # W3 row (VPU head)
        pl.BlockSpec((1, 1), lambda i: (0, 0)),                # b3
    ]
    # Lane-dense output row; partial final block is masked on writeback.
    out_spec = pl.BlockSpec((1, tm), lambda i: (0, i))

    q_row = pl.pallas_call(
        critic_kernel,
        out_shape=jax.ShapeDtypeStruct((1, B), jnp.float32),
        grid=grid,
        in_specs=in_specs,
        out_specs=out_spec,
        compiler_params=pltpu.CompilerParams(
            dimension_semantics=("parallel",),
            vmem_limit_bytes=32 * 1024 * 1024),
    )(x, w1c, b1f, w2c, b2f, w3f, b3f)
    return q_row.reshape(B, 1)


def init_critic_params(key, input_dims, n_actions, fc1_dims=256, fc2_dims=256):
    """nn.Linear-style U(-1/sqrt(fan_in), 1/sqrt(fan_in)) init.

    Weights stored (in, out) so the kernel computes x @ W + b; fc_q is stored as a
    (1, fc2) row for the VPU multiply-and-reduce head.
    """
    def linear(key, fan_in, fan_out):
        kw, kb = jax.random.split(key)
        bound = 1.0 / jnp.sqrt(fan_in)
        w = jax.random.uniform(kw, (fan_in, fan_out), jnp.float32, -bound, bound)
        b = jax.random.uniform(kb, (1, fan_out), jnp.float32, -bound, bound)
        return w, b

    k1, k2, k3 = jax.random.split(key, 3)
    w1, b1 = linear(k1, input_dims + n_actions, fc1_dims)
    w2, b2 = linear(k2, fc1_dims, fc2_dims)
    w3, b3 = linear(k3, fc2_dims, 1)
    w3 = w3.T  # (1, fc2) row for the VPU head
    return (w1, b1, w2, b2, w3, b3)


def _reference(state, action, params):
    w1, b1, w2, b2, w3, b3 = params
    x = jnp.concatenate([state, action], axis=1)
    h1 = jnp.maximum(x @ w1 + b1, 0.0)
    h2 = jnp.maximum(h1 @ w2 + b2, 0.0)
    return h2 @ w3.T + b3


if __name__ == "__main__":
    # Pendulum-like sizes: input_dims=3, n_actions=1.
    input_dims, n_actions = 3, 1

    key = jax.random.PRNGKey(0)
    k_params, k_s1, k_a1, k_s2, k_a2 = jax.random.split(key, 5)
    params = init_critic_params(k_params, input_dims, n_actions)

    # --- Small batch: single grid step (padded tile, masked output store). ---
    B1 = 8
    state1 = jax.random.normal(k_s1, (B1, input_dims), jnp.float32)
    action1 = jax.random.normal(k_a1, (B1, n_actions), jnp.float32)

    q1 = critic_forward(state1, action1, params)
    jax.block_until_ready(q1)
    q1_ref = _reference(state1, action1, params)
    assert q1.shape == (B1, 1)
    assert jnp.allclose(q1, q1_ref, atol=1e-4), "f32 small-batch mismatch"

    # --- Larger batch: 2 grid steps with a partial final tile. ---
    B2 = 300
    state2 = jax.random.normal(k_s2, (B2, input_dims), jnp.float32)
    action2 = jax.random.normal(k_a2, (B2, n_actions), jnp.float32)

    q2 = critic_forward(state2, action2, params)
    jax.block_until_ready(q2)
    q2_ref = _reference(state2, action2, params)
    assert q2.shape == (B2, 1)
    assert jnp.allclose(q2, q2_ref, atol=1e-4), "f32 multi-tile mismatch"

    # --- bf16 MXU operands, f32 accumulation (fast path on v5e/v6e/v7x). ---
    q2_bf16 = critic_forward(state2, action2, params, compute_dtype=jnp.bfloat16)
    jax.block_until_ready(q2_bf16)
    assert q2_bf16.shape == (B2, 1)
    assert jnp.all(jnp.isfinite(q2_bf16))
    assert jnp.allclose(q2_bf16, q2_ref, atol=5e-2), "bf16 path diverged"

    print("KERNEL_OK")
</pallas_src>

<mosaic_0001>
module attributes {stable_mosaic.version = 11 : i64} {
  func.func @critic_kernel(%arg0: i32, %arg1: memref<128x4xf32, #tpu.memory_space<vmem>>, %arg2: memref<4x256xf32, #tpu.memory_space<vmem>>, %arg3: memref<1x256xf32, #tpu.memory_space<vmem>>, %arg4: memref<256x256xf32, #tpu.memory_space<vmem>>, %arg5: memref<1x256xf32, #tpu.memory_space<vmem>>, %arg6: memref<1x256xf32, #tpu.memory_space<vmem>>, %arg7: memref<1x1xf32, #tpu.memory_space<vmem>>, %arg8: memref<1x128xf32, #tpu.memory_space<vmem>>) attributes {dimension_semantics = [#tpu.dimension_semantics<parallel>], iteration_bounds = array<i64: 1>, scalar_prefetch = 0 : i64, scratch_operands = 0 : i64, tpu.core_type = #tpu.core_type<tc>, window_params = [{transform_indices = @transform_0, window_bounds = array<i64: 128, 4>}, {pipeline_mode = #tpu.pipeline_mode<synchronous>, transform_indices = @transform_1, window_bounds = array<i64: 4, 256>}, {pipeline_mode = #tpu.pipeline_mode<synchronous>, transform_indices = @transform_2, window_bounds = array<i64: 1, 256>}, {pipeline_mode = #tpu.pipeline_mode<synchronous>, transform_indices = @transform_3, window_bounds = array<i64: 256, 256>}, {pipeline_mode = #tpu.pipeline_mode<synchronous>, transform_indices = @transform_4, window_bounds = array<i64: 1, 256>}, {pipeline_mode = #tpu.pipeline_mode<synchronous>, transform_indices = @transform_5, window_bounds = array<i64: 1, 256>}, {pipeline_mode = #tpu.pipeline_mode<synchronous>, transform_indices = @transform_6, window_bounds = array<i64: 1, 1>}, {transform_indices = @transform_7, window_bounds = array<i64: 1, 128>}]} {
    %c0 = arith.constant 0 : index
    %c0_0 = arith.constant 0 : index
    %0 = vector.load %arg1[%c0, %c0_0] : memref<128x4xf32, #tpu.memory_space<vmem>>, vector<128x4xf32>
    %c0_1 = arith.constant 0 : index
    %c0_2 = arith.constant 0 : index
    %1 = vector.load %arg2[%c0_1, %c0_2] : memref<4x256xf32, #tpu.memory_space<vmem>>, vector<4x256xf32>
    %cst = arith.constant dense<0.000000e+00> : vector<128x256xf32>
    %2 = tpu.matmul %0, %1, %cst {dimension_numbers = #tpu.dot_dimension_numbers<[1], [0], [0], [1], [0, 0, 1, 1], [], []>} : vector<128x4xf32>, vector<4x256xf32>, vector<128x256xf32> -> vector<128x256xf32>
    %c0_3 = arith.constant 0 : index
    %c0_4 = arith.constant 0 : index
    %3 = vector.load %arg3[%c0_3, %c0_4] : memref<1x256xf32, #tpu.memory_space<vmem>>, vector<1x256xf32>
    %4 = vector.broadcast %3 : vector<1x256xf32> to vector<128x256xf32>
    %5 = arith.addf %2, %4 : vector<128x256xf32>
    %cst_5 = arith.constant 0.000000e+00 : f32
    %6 = vector.broadcast %cst_5 : f32 to vector<128x256xf32>
    %7 = arith.maximumf %5, %6 : vector<128x256xf32>
    %c0_6 = arith.constant 0 : index
    %c0_7 = arith.constant 0 : index
    %8 = vector.load %arg4[%c0_6, %c0_7] : memref<256x256xf32, #tpu.memory_space<vmem>>, vector<256x256xf32>
    %cst_8 = arith.constant dense<0.000000e+00> : vector<128x256xf32>
    %9 = tpu.matmul %7, %8, %cst_8 {dimension_numbers = #tpu.dot_dimension_numbers<[1], [0], [0], [1], [0, 0, 1, 1], [], []>} : vector<128x256xf32>, vector<256x256xf32>, vector<128x256xf32> -> vector<128x256xf32>
    %c0_9 = arith.constant 0 : index
    %c0_10 = arith.constant 0 : index
    %10 = vector.load %arg5[%c0_9, %c0_10] : memref<1x256xf32, #tpu.memory_space<vmem>>, vector<1x256xf32>
    %11 = vector.broadcast %10 : vector<1x256xf32> to vector<128x256xf32>
    %12 = arith.addf %9, %11 : vector<128x256xf32>
    %cst_11 = arith.constant 0.000000e+00 : f32
    %13 = vector.broadcast %cst_11 : f32 to vector<128x256xf32>
    %14 = arith.maximumf %12, %13 : vector<128x256xf32>
    %c0_12 = arith.constant 0 : index
    %c0_13 = arith.constant 0 : index
    %15 = vector.load %arg6[%c0_12, %c0_13] : memref<1x256xf32, #tpu.memory_space<vmem>>, vector<1x256xf32>
    %16 = vector.broadcast %15 : vector<1x256xf32> to vector<128x256xf32>
    %17 = arith.mulf %14, %16 : vector<128x256xf32>
    %cst_14 = arith.constant dense<0.000000e+00> : vector<128xf32>
    %18 = vector.multi_reduction <add>, %17, %cst_14 [1] : vector<128x256xf32> to vector<128xf32>
    %19 = vector.shape_cast %18 : vector<128xf32> to vector<1x128xf32>
    %c0_15 = arith.constant 0 : index
    %c0_16 = arith.constant 0 : index
    %20 = vector.load %arg7[%c0_15, %c0_16] : memref<1x1xf32, #tpu.memory_space<vmem>>, vector<1x1xf32>
    %21 = vector.broadcast %20 : vector<1x1xf32> to vector<1x128xf32>
    %22 = arith.addf %19, %21 : vector<1x128xf32>
    %c0_17 = arith.constant 0 : index
    %c0_18 = arith.constant 0 : index
    %23 = vector.load %arg8[%c0_17, %c0_18] : memref<1x128xf32, #tpu.memory_space<vmem>>, vector<1x128xf32>
    tpu.vector_store %arg8[%c0_17, %c0_18], %22 {strides = array<i32>} : memref<1x128xf32, #tpu.memory_space<vmem>>, vector<1x128xf32>,
    return
  }
  func.func @transform_0(%arg0: i32) -> (i32, i32) {
    %c0_i32 = arith.constant 0 : i32
    %c0_i32_0 = arith.constant 0 : i32
    return %arg0, %c0_i32 : i32, i32
  }
  func.func @transform_1(%arg0: i32) -> (i32, i32) {
    %c0_i32 = arith.constant 0 : i32
    %c0_i32_0 = arith.constant 0 : i32
    %c0_i32_1 = arith.constant 0 : i32
    return %c0_i32, %c0_i32_0 : i32, i32
  }
  func.func @transform_2(%arg0: i32) -> (i32, i32) {
    %c0_i32 = arith.constant 0 : i32
    %c0_i32_0 = arith.constant 0 : i32
    %c0_i32_1 = arith.constant 0 : i32
    return %c0_i32, %c0_i32_0 : i32, i32
  }
  func.func @transform_3(%arg0: i32) -> (i32, i32) {
    %c0_i32 = arith.constant 0 : i32
    %c0_i32_0 = arith.constant 0 : i32
    %c0_i32_1 = arith.constant 0 : i32
    return %c0_i32, %c0_i32_0 : i32, i32
  }
  func.func @transform_4(%arg0: i32) -> (i32, i32) {
    %c0_i32 = arith.constant 0 : i32
    %c0_i32_0 = arith.constant 0 : i32
    %c0_i32_1 = arith.constant 0 : i32
    return %c0_i32, %c0_i32_0 : i32, i32
  }
  func.func @transform_5(%arg0: i32) -> (i32, i32) {
    %c0_i32 = arith.constant 0 : i32
    %c0_i32_0 = arith.constant 0 : i32
    %c0_i32_1 = arith.constant 0 : i32
    return %c0_i32, %c0_i32_0 : i32, i32
  }
  func.func @transform_6(%arg0: i32) -> (i32, i32) {
    %c0_i32 = arith.constant 0 : i32
    %c0_i32_0 = arith.constant 0 : i32
    %c0_i32_1 = arith.constant 0 : i32
    return %c0_i32, %c0_i32_0 : i32, i32
  }
  func.func @transform_7(%arg0: i32) -> (i32, i32) {
    %c0_i32 = arith.constant 0 : i32
    %c0_i32_0 = arith.constant 0 : i32
    return %c0_i32, %arg0 : i32, i32
  }
}

</mosaic_0001>

<llo_original>
// kernel: tpu_custom_call.1
$region0: #{tpu_custom_call.1}
  #allocation0 [shape = 'u32[]', space=smem, size = 0x4, offset = 0x4, fixed_abs, tag = 'smem constant byte address 0x4 - core index']
  #allocation1 [shape = 'u32[72,128]{1,0:T(1,128)}', space=vmem, size = 0x9000, scoped, tag = 'internal scratch']
  #allocation2 [shape = 'f32[1,1]{1,0:T(1,128)S(1)}', space=vmem, size = 0x200, scoped, tag = 'scoped memory for tpu_custom_call.1']
  %s0 = inlined_call_operand.vmem [shape: f32[8,4], index: 0, kind: input, shape index: {}]
  %s1 = inlined_call_operand.vmem [shape: f32[4,256], index: 1, kind: input, shape index: {}]
  %s2 = inlined_call_operand.vmem [shape: f32[1,256], index: 2, kind: input, shape index: {}]
  %s3 = inlined_call_operand.hbm [shape: f32[256,256], index: 3, kind: input, shape index: {}]
  %s4 = inlined_call_operand.vmem [shape: f32[1,256], index: 4, kind: input, shape index: {}]
  %s5 = inlined_call_operand.vmem [shape: f32[1,256], index: 5, kind: input, shape index: {}]
  %s6 = inlined_call_operand.<no memory space> [shape: f32[1,1], index: 6, kind: input, shape index: {}]
  %s7 = inlined_call_operand.hbm [shape: f32[1,8], index: 7, kind: output, shape index: {}]
  %s8 = sld [smem:[#allocation0]]
  $region42: #{tpu_custom_call.1} parent=0
    _
  %s10 = ssub.s32 1, %s8
  %s11 = scalar_select 0, %s10, %s8
  %v12 = vstv %s6
  %13 = vst [vmem:[#allocation2] sm:$0x1] %v12
  $region1: #{tpu_custom_call.1} parent=0
    #allocation3 [shape = 'u8[262144]{0}', space=vmem, size = 0x40000, scoped, tag = 'input window, operand 3, single buffered']
    #allocation4 [shape = 's32[1]{0}', space=sflag, size = 0x4, scoped, tag = 'scoped memory for tpu_custom_call.1']
    #allocation5 [shape = 's32[1]{0}', space=sflag, size = 0x4, scoped, tag = 'scoped memory for tpu_custom_call.1']
    #allocation6 [shape = 'u8[512]{0}', space=vmem, size = 0x400, scoped, tag = 'output window, operand 0, single buffered']
    %14 = vsyncpa [#allocation4], 0
    %15 = vsyncpa [#allocation5], 0
    // Predicated region
    $region2: #{tpu_custom_call.1} parent=1 // pred_check
      _
    $region3: #{tpu_custom_call.1} parent=1 // pred_check_branch
      %17 = sbr.rel (0) target = $region5
    $region4: #{tpu_custom_call.1} parent=1 // pred_region
      _
    $region5: #{tpu_custom_call.1} parent=1 // pred_fallthru
      _
    // Predicated region
    $region6: #{tpu_custom_call.1} parent=1 // pred_check
      _
    $region7: #{tpu_custom_call.1} parent=1 // pred_check_branch
      %19 = sbr.rel (0) target = $region9
    $region8: #{tpu_custom_call.1} parent=1 // pred_region
      _
    $region9: #{tpu_custom_call.1} parent=1 // pred_fallthru
      _
    // Predicated region
    $region10: #{tpu_custom_call.1} parent=1 // pred_check
      _
    $region11: #{tpu_custom_call.1} parent=1 // pred_check_branch
      %21 = sbr.rel (0) target = $region13
    $region12: #{tpu_custom_call.1} parent=1 // pred_region
      _
    $region13: #{tpu_custom_call.1} parent=1 // pred_fallthru
      _
    // Predicated region
    $region14: #{tpu_custom_call.1} parent=1 // pred_check
      _
    $region15: #{tpu_custom_call.1} parent=1 // pred_check_branch
      %23 = sbr.rel (0) target = $region17
    $region16: #{tpu_custom_call.1} parent=1 // pred_region
      %25 = vsyncadd [#allocation4], 0
      %s26 = sshll.u32 %s3, 4
      %s27 = int_to_ptr.hbm [resolvable:$true] %s26
      %s28 = sshll.u32 [#allocation3], 4
      %s29 = int_to_ptr.vmem [resolvable:$true] %s28
      %34 = dma.hbm_to_vmem [thread:$0]  %s27, 8192, %s29, [#allocation4], 256, 256, 16
    $region17: #{tpu_custom_call.1} parent=1 // pred_fallthru
      _
    // Predicated region
    $region18: #{tpu_custom_call.1} parent=1 // pred_check
      _
    $region19: #{tpu_custom_call.1} parent=1 // pred_check_branch
      %36 = sbr.rel (0) target = $region21
    $region20: #{tpu_custom_call.1} parent=1 // pred_region
      _
    $region21: #{tpu_custom_call.1} parent=1 // pred_fallthru
      _
    // Predicated region
    $region22: #{tpu_custom_call.1} parent=1 // pred_check
      _
    $region23: #{tpu_custom_call.1} parent=1 // pred_check_branch
      %38 = sbr.rel (0) target = $region25
    $region24: #{tpu_custom_call.1} parent=1 // pred_region
      _
    $region25: #{tpu_custom_call.1} parent=1 // pred_fallthru
      _
    // Predicated region
    $region26: #{tpu_custom_call.1} parent=1 // pred_check
      _
    $region27: #{tpu_custom_call.1} parent=1 // pred_check_branch
      %40 = sbr.rel (0) target = $region29
    $region28: #{tpu_custom_call.1} parent=1 // pred_region
      _
    $region29: #{tpu_custom_call.1} parent=1 // pred_fallthru
      _
    // Predicated region
    $region30: #{tpu_custom_call.1} parent=1 // pred_check
      _
    $region31: #{tpu_custom_call.1} parent=1 // pred_check_branch
      %42 = sbr.rel (0) target = $region33
    $region32: #{tpu_custom_call.1} parent=1 // pred_region
      %44 = dma.done [#allocation4], 8192
    $region33: #{tpu_custom_call.1} parent=1 // pred_fallthru
      _
    %v45 = vld [vmem:[%s0] sm:$0xff]
    %v46 = vld [vmem:[%s0 + $0x8] sm:$0xff]
    %v47 = vld [vmem:[%s0 + $0x10] sm:$0xff]
    %v48 = vld [vmem:[%s0 + $0x18] sm:$0xff]
    %v49 = vld [vmem:[%s0 + $0x20] sm:$0xff]
    %v50 = vld [vmem:[%s0 + $0x28] sm:$0xff]
    %v51 = vld [vmem:[%s0 + $0x30] sm:$0xff]
    %v52 = vld [vmem:[%s0 + $0x38] sm:$0xff]
    %v53 = vld [vmem:[%s0 + $0x40] sm:$0xff]
    %v54 = vld [vmem:[%s0 + $0x48] sm:$0xff]
    %v55 = vld [vmem:[%s0 + $0x50] sm:$0xff]
    %v56 = vld [vmem:[%s0 + $0x58] sm:$0xff]
    %v57 = vld [vmem:[%s0 + $0x60] sm:$0xff]
    %v58 = vld [vmem:[%s0 + $0x68] sm:$0xff]
    %v59 = vld [vmem:[%s0 + $0x70] sm:$0xff]
    %v60 = vld [vmem:[%s0 + $0x78] sm:$0xff]
    %v61 = vld [vmem:[%s1] sm:$0xff]
    %v62 = vld [vmem:[%s2] sm:$0x3]
    %v64 = vperm.slane %v62, 0
    %v65 = vperm.slane %v62, 1
    %69 = vst [vmem:[#allocation1] ss:$2 sm:$0xff] %v61
    %v70 = vld.sshfl [vmem:[#allocation1] sm:$0xff pattern:$0x75316420]
    %v71 = vld.sshfl [vmem:[#allocation1 + $0x8] sm:$0xff pattern:$0x75316420]
    %vm72 = vcmask 31744
    %v74 = vsel %vm72, %v45, 0
    %v77 = vsel %vm72, %v46, 0
    %v80 = vsel %vm72, %v47, 0
    %v83 = vsel %vm72, %v48, 0
    %v86 = vsel %vm72, %v49, 0
    %v89 = vsel %vm72, %v50, 0
    %v92 = vsel %vm72, %v51, 0
    %v95 = vsel %vm72, %v52, 0
    %v98 = vsel %vm72, %v53, 0
    %v101 = vsel %vm72, %v54, 0
    %v104 = vsel %vm72, %v55, 0
    %v107 = vsel %vm72, %v56, 0
    %v110 = vsel %vm72, %v57, 0
    %v113 = vsel %vm72, %v58, 0
    %v116 = vsel %vm72, %v59, 0
    %v119 = vsel %vm72, %v60, 0
    %vm121 = vcmask 1043456
    %v122 = vsel %vm121, %v70, 0
    %v124 = vsel %vm121, %v71, 0
    %126 = vmatpush.msra.mxu0 0.0
    %127 = vmatpush.msra.mxu0 0.0
    %128 = vmatpush.msra.mxu0 0.0
    %129 = vmatpush.msra.mxu0 0.0
    %130 = vmatpush.msra.mxu0 0.0
    %131 = vmatpush.msra.mxu0 0.0
    %132 = vmatpush.msra.mxu0 0.0
    %133 = vmatpush.msra.mxu0 0.0
    %134 = vmatpush.msra.mxu0 0.0
    %135 = vmatpush.msra.mxu0 0.0
    %136 = vmatpush.msra.mxu0 0.0
    %137 = vmatpush.msra.mxu0 0.0
    %138 = vmatpush.msra.mxu0 0.0
    %139 = vmatpush.msra.mxu0 0.0
    %140 = vmatpush.msra.mxu0 0.0
    %141 = vmatpush.msra.mxu0 %v122
    %142 = vmatmul.f32.gmra.mxu0 %v74
    %v143 = vpop.f32.mrf.mxu0
    %v144 = vadd.f32 %v64, %v143
    %145 = vmatmul.f32.gmra.mxu0 %v77
    %v146 = vpop.f32.mrf.mxu0
    %v147 = vadd.f32 %v64, %v146
    %148 = vmatmul.f32.gmra.mxu0 %v80
    %v149 = vpop.f32.mrf.mxu0
    %v150 = vadd.f32 %v64, %v149
    %151 = vmatmul.f32.gmra.mxu0 %v83
    %v152 = vpop.f32.mrf.mxu0
    %v153 = vadd.f32 %v64, %v152
    %154 = vmatmul.f32.gmra.mxu0 %v86
    %v155 = vpop.f32.mrf.mxu0
    %v156 = vadd.f32 %v64, %v155
    %157 = vmatmul.f32.gmra.mxu0 %v89
    %v158 = vpop.f32.mrf.mxu0
    %v159 = vadd.f32 %v64, %v158
    %160 = vmatmul.f32.gmra.mxu0 %v92
    %v161 = vpop.f32.mrf.mxu0
    %v162 = vadd.f32 %v64, %v161
    %163 = vmatmul.f32.gmra.mxu0 %v95
    %v164 = vpop.f32.mrf.mxu0
    %v165 = vadd.f32 %v64, %v164
    %166 = vmatmul.f32.gmra.mxu0 %v98
    %v167 = vpop.f32.mrf.mxu0
    %v168 = vadd.f32 %v64, %v167
    %169 = vmatmul.f32.gmra.mxu0 %v101
    %v170 = vpop.f32.mrf.mxu0
    %v171 = vadd.f32 %v64, %v170
    %172 = vmatmul.f32.gmra.mxu0 %v104
    %v173 = vpop.f32.mrf.mxu0
    %v174 = vadd.f32 %v64, %v173
    %175 = vmatmul.f32.gmra.mxu0 %v107
    %v176 = vpop.f32.mrf.mxu0
    %v177 = vadd.f32 %v64, %v176
    %178 = vmatmul.f32.gmra.mxu0 %v110
    %v179 = vpop.f32.mrf.mxu0
    %v180 = vadd.f32 %v64, %v179
    %181 = vmatmul.f32.gmra.mxu0 %v113
    %v182 = vpop.f32.mrf.mxu0
    %v183 = vadd.f32 %v64, %v182
    %184 = vmatmul.f32.gmra.mxu0 %v116
    %v185 = vpop.f32.mrf.mxu0
    %v186 = vadd.f32 %v64, %v185
    %187 = vmatmul.f32.gmra.mxu0 %v119
    %v188 = vpop.f32.mrf.mxu0
    %v189 = vadd.f32 %v64, %v188
    %190 = vdwg.mxu0
    %191 = vmatpush.msra.mxu0 0.0
    %192 = vmatpush.msra.mxu0 0.0
    %193 = vmatpush.msra.mxu0 0.0
    %194 = vmatpush.msra.mxu0 0.0
    %195 = vmatpush.msra.mxu0 0.0
    %196 = vmatpush.msra.mxu0 0.0
    %197 = vmatpush.msra.mxu0 0.0
    %198 = vmatpush.msra.mxu0 0.0
    %199 = vmatpush.msra.mxu0 0.0
    %200 = vmatpush.msra.mxu0 0.0
    %201 = vmatpush.msra.mxu0 0.0
    %202 = vmatpush.msra.mxu0 0.0
    %203 = vmatpush.msra.mxu0 0.0
    %204 = vmatpush.msra.mxu0 0.0
    %205 = vmatpush.msra.mxu0 0.0
    %206 = vmatpush.msra.mxu0 %v124
    %207 = vmatmul.f32.gmra.mxu0 %v74
    %v208 = vpop.f32.mrf.mxu0
    %v209 = vadd.f32 %v65, %v208
    %210 = vmatmul.f32.gmra.mxu0 %v77
    %v211 = vpop.f32.mrf.mxu0
    %v212 = vadd.f32 %v65, %v211
    %213 = vmatmul.f32.gmra.mxu0 %v80
    %v214 = vpop.f32.mrf.mxu0
    %v215 = vadd.f32 %v65, %v214
    %216 = vmatmul.f32.gmra.mxu0 %v83
    %v217 = vpop.f32.mrf.mxu0
    %v218 = vadd.f32 %v65, %v217
    %219 = vmatmul.f32.gmra.mxu0 %v86
    %v220 = vpop.f32.mrf.mxu0
    %v221 = vadd.f32 %v65, %v220
    %222 = vmatmul.f32.gmra.mxu0 %v89
    %v223 = vpop.f32.mrf.mxu0
    %v224 = vadd.f32 %v65, %v223
    %225 = vmatmul.f32.gmra.mxu0 %v92
    %v226 = vpop.f32.mrf.mxu0
    %v227 = vadd.f32 %v65, %v226
    %228 = vmatmul.f32.gmra.mxu0 %v95
    %v229 = vpop.f32.mrf.mxu0
    %v230 = vadd.f32 %v65, %v229
    %231 = vmatmul.f32.gmra.mxu0 %v98
    %v232 = vpop.f32.mrf.mxu0
    %v233 = vadd.f32 %v65, %v232
    %234 = vmatmul.f32.gmra.mxu0 %v101
    %v235 = vpop.f32.mrf.mxu0
    %v236 = vadd.f32 %v65, %v235
    %237 = vmatmul.f32.gmra.mxu0 %v104
    %v238 = vpop.f32.mrf.mxu0
    %v239 = vadd.f32 %v65, %v238
    %240 = vmatmul.f32.gmra.mxu0 %v107
    %v241 = vpop.f32.mrf.mxu0
    %v242 = vadd.f32 %v65, %v241
    %243 = vmatmul.f32.gmra.mxu0 %v110
    %v244 = vpop.f32.mrf.mxu0
    %v245 = vadd.f32 %v65, %v244
    %246 = vmatmul.f32.gmra.mxu0 %v113
    %v247 = vpop.f32.mrf.mxu0
    %v248 = vadd.f32 %v65, %v247
    %249 = vmatmul.f32.gmra.mxu0 %v116
    %v250 = vpop.f32.mrf.mxu0
    %v251 = vadd.f32 %v65, %v250
    %252 = vmatmul.f32.gmra.mxu0 %v119
    %v253 = vpop.f32.mrf.mxu0
    %v254 = vadd.f32 %v65, %v253
    %255 = vdwg.mxu0
    %v256 = vmax.f32 %v144, 0.0
    %v257 = vmax.f32 %v209, 0.0
    %v258 = vmax.f32 %v147, 0.0
    %v259 = vmax.f32 %v212, 0.0
    %v260 = vmax.f32 %v150, 0.0
    %v261 = vmax.f32 %v215, 0.0
    %v262 = vmax.f32 %v153, 0.0
    %v263 = vmax.f32 %v218, 0.0
    %v264 = vmax.f32 %v156, 0.0
    %v265 = vmax.f32 %v221, 0.0
    %v266 = vmax.f32 %v159, 0.0
    %v267 = vmax.f32 %v224, 0.0
    %v268 = vmax.f32 %v162, 0.0
    %v269 = vmax.f32 %v227, 0.0
    %v270 = vmax.f32 %v165, 0.0
    %v271 = vmax.f32 %v230, 0.0
    %v272 = vmax.f32 %v168, 0.0
    %v273 = vmax.f32 %v233, 0.0
    %v274 = vmax.f32 %v171, 0.0
    %v275 = vmax.f32 %v236, 0.0
    %v276 = vmax.f32 %v174, 0.0
    %v277 = vmax.f32 %v239, 0.0
    %v278 = vmax.f32 %v177, 0.0
    %v279 = vmax.f32 %v242, 0.0
    %v280 = vmax.f32 %v180, 0.0
    %v281 = vmax.f32 %v245, 0.0
    %v282 = vmax.f32 %v183, 0.0
    %v283 = vmax.f32 %v248, 0.0
    %v284 = vmax.f32 %v186, 0.0
    %v285 = vmax.f32 %v251, 0.0
    %v286 = vmax.f32 %v189, 0.0
    %v287 = vmax.f32 %v254, 0.0
    %v288 = vld [vmem:[#allocation3] sm:$0xff]
    %v289 = vld [vmem:[#allocation3 + $0x8] sm:$0xff]
    %v290 = vld [vmem:[#allocation3 + $0x10] sm:$0xff]
    %v291 = vld [vmem:[#allocation3 + $0x18] sm:$0xff]
    %v292 = vld [vmem:[#allocation3 + $0x20] sm:$0xff]
    %v293 = vld [vmem:[#allocation3 + $0x28] sm:$0xff]
    %v294 = vld [vmem:[#allocation3 + $0x30] sm:$0xff]
    %v295 = vld [vmem:[#allocation3 + $0x38] sm:$0xff]
    %v296 = vld [vmem:[#allocation3 + $0x40] sm:$0xff]
    %v297 = vld [vmem:[#allocation3 + $0x48] sm:$0xff]
    %v298 = vld [vmem:[#allocation3 + $0x50] sm:$0xff]
    %v299 = vld [vmem:[#allocation3 + $0x58] sm:$0xff]
    %v300 = vld [vmem:[#allocation3 + $0x60] sm:$0xff]
    %v301 = vld [vmem:[#allocation3 + $0x68] sm:$0xff]
    %v302 = vld [vmem:[#allocation3 + $0x70] sm:$0xff]
    %v303 = vld [vmem:[#allocation3 + $0x78] sm:$0xff]
    %v304 = vld [vmem:[#allocation3 + $0x80] sm:$0xff]
    %v305 = vld [vmem:[#allocation3 + $0x88] sm:$0xff]
    %v306 = vld [vmem:[#allocation3 + $0x90] sm:$0xff]
    %v307 = vld [vmem:[#allocation3 + $0x98] sm:$0xff]
    %v308 = vld [vmem:[#allocation3 + $0xa0] sm:$0xff]
    %v309 = vld [vmem:[#allocation3 + $0xa8] sm:$0xff]
    %v310 = vld [vmem:[#allocation3 + $0xb0] sm:$0xff]
    %v311 = vld [vmem:[#allocation3 + $0xb8] sm:$0xff]
    %v312 = vld [vmem:[#allocation3 + $0xc0] sm:$0xff]
    %v313 = vld [vmem:[#allocation3 + $0xc8] sm:$0xff]
    %v314 = vld [vmem:[#allocation3 + $0xd0] sm:$0xff]
    %v315 = vld [vmem:[#allocation3 + $0xd8] sm:$0xff]
    %v316 = vld [vmem:[#allocation3 + $0xe0] sm:$0xff]
    %v317 = vld [vmem:[#allocation3 + $0xe8] sm:$0xff]
    %v318 = vld [vmem:[#allocation3 + $0xf0] sm:$0xff]
    %v319 = vld [vmem:[#allocation3 + $0xf8] sm:$0xff]
    %v320 = vld [vmem:[#allocation3 + $0x100] sm:$0xff]
    %v321 = vld [vmem:[#allocation3 + $0x108] sm:$0xff]
    %v322 = vld [vmem:[#allocation3 + $0x110] sm:$0xff]
    %v323 = vld [vmem:[#allocation3 + $0x118] sm:$0xff]
    %v324 = vld [vmem:[#allocation3 + $0x120] sm:$0xff]
    %v325 = vld [vmem:[#allocation3 + $0x128] sm:$0xff]
    %v326 = vld [vmem:[#allocation3 + $0x130] sm:$0xff]
    %v327 = vld [vmem:[#allocation3 + $0x138] sm:$0xff]
    %v328 = vld [vmem:[#allocation3 + $0x140] sm:$0xff]
    %v329 = vld [vmem:[#allocation3 + $0x148] sm:$0xff]
    %v330 = vld [vmem:[#allocation3 + $0x150] sm:$0xff]
    %v331 = vld [vmem:[#allocation3 + $0x158] sm:$0xff]
    %v332 = vld [vmem:[#allocation3 + $0x160] sm:$0xff]
    %v333 = vld [vmem:[#allocation3 + $0x168] sm:$0xff]
    %v334 = vld [vmem:[#allocation3 + $0x170] sm:$0xff]
    %v335 = vld [vmem:[#allocation3 + $0x178] sm:$0xff]
    %v336 = vld [vmem:[#allocation3 + $0x180] sm:$0xff]
    %v337 = vld [vmem:[#allocation3 + $0x188] sm:$0xff]
    %v338 = vld [vmem:[#allocation3 + $0x190] sm:$0xff]
    %v339 = vld [vmem:[#allocation3 + $0x198] sm:$0xff]
    %v340 = vld [vmem:[#allocation3 + $0x1a0] sm:$0xff]
    %v341 = vld [vmem:[#allocation3 + $0x1a8] sm:$0xff]
    %v342 = vld [vmem:[#allocation3 + $0x1b0] sm:$0xff]
    %v343 = vld [vmem:[#allocation3 + $0x1b8] sm:$0xff]
    %v344 = vld [vmem:[#allocation3 + $0x1c0] sm:$0xff]
    %v345 = vld [vmem:[#allocation3 + $0x1c8] sm:$0xff]
    %v346 = vld [vmem:[#allocation3 + $0x1d0] sm:$0xff]
    %v347 = vld [vmem:[#allocation3 + $0x1d8] sm:$0xff]
    %v348 = vld [vmem:[#allocation3 + $0x1e0] sm:$0xff]
    %v349 = vld [vmem:[#allocation3 + $0x1e8] sm:$0xff]
    %v350 = vld [vmem:[#allocation3 + $0x1f0] sm:$0xff]
    %v351 = vld [vmem:[#allocation3 + $0x1f8] sm:$0xff]
    %v352 = vld [vmem:[%s4] sm:$0x3]
    %v354 = vperm.slane %v352, 0
    %v355 = vperm.slane %v352, 1
    %358 = vmatpush.msra.mxu0 %v318
    %359 = vmatpush.msra.mxu0 %v316
    %360 = vmatpush.msra.mxu0 %v314
    %361 = vmatpush.msra.mxu0 %v312
    %362 = vmatpush.msra.mxu0 %v310
    %363 = vmatpush.msra.mxu0 %v308
    %364 = vmatpush.msra.mxu0 %v306
    %365 = vmatpush.msra.mxu0 %v304
    %366 = vmatpush.msra.mxu0 %v302
    %367 = vmatpush.msra.mxu0 %v300
    %368 = vmatpush.msra.mxu0 %v298
    %369 = vmatpush.msra.mxu0 %v296
    %370 = vmatpush.msra.mxu0 %v294
    %371 = vmatpush.msra.mxu0 %v292
    %372 = vmatpush.msra.mxu0 %v290
    %373 = vmatpush.msra.mxu0 %v288
    %374 = vmatmul.f32.gmra.mxu0 %v256
    %v375 = vpop.f32.mrf.mxu0
    %v376 = vadd.f32 %v354, %v375
    %377 = vmatmul.f32.gmra.mxu0 %v258
    %v378 = vpop.f32.mrf.mxu0
    %v379 = vadd.f32 %v354, %v378
    %380 = vmatmul.f32.gmra.mxu0 %v260
    %v381 = vpop.f32.mrf.mxu0
    %v382 = vadd.f32 %v354, %v381
    %383 = vmatmul.f32.gmra.mxu0 %v262
    %v384 = vpop.f32.mrf.mxu0
    %v385 = vadd.f32 %v354, %v384
    %386 = vmatmul.f32.gmra.mxu0 %v264
    %v387 = vpop.f32.mrf.mxu0
    %v388 = vadd.f32 %v354, %v387
    %389 = vmatmul.f32.gmra.mxu0 %v266
    %v390 = vpop.f32.mrf.mxu0
    %v391 = vadd.f32 %v354, %v390
    %392 = vmatmul.f32.gmra.mxu0 %v268
    %v393 = vpop.f32.mrf.mxu0
    %v394 = vadd.f32 %v354, %v393
    %395 = vmatmul.f32.gmra.mxu0 %v270
    %v396 = vpop.f32.mrf.mxu0
    %v397 = vadd.f32 %v354, %v396
    %398 = vmatmul.f32.gmra.mxu0 %v272
    %v399 = vpop.f32.mrf.mxu0
    %v400 = vadd.f32 %v354, %v399
    %401 = vmatmul.f32.gmra.mxu0 %v274
    %v402 = vpop.f32.mrf.mxu0
    %v403 = vadd.f32 %v354, %v402
    %404 = vmatmul.f32.gmra.mxu0 %v276
    %v405 = vpop.f32.mrf.mxu0
    %v406 = vadd.f32 %v354, %v405
    %407 = vmatmul.f32.gmra.mxu0 %v278
    %v408 = vpop.f32.mrf.mxu0
    %v409 = vadd.f32 %v354, %v408
    %410 = vmatmul.f32.gmra.mxu0 %v280
    %v411 = vpop.f32.mrf.mxu0
    %v412 = vadd.f32 %v354, %v411
    %413 = vmatmul.f32.gmra.mxu0 %v282
    %v414 = vpop.f32.mrf.mxu0
    %v415 = vadd.f32 %v354, %v414
    %416 = vmatmul.f32.gmra.mxu0 %v284
    %v417 = vpop.f32.mrf.mxu0
    %v418 = vadd.f32 %v354, %v417
    %419 = vmatmul.f32.gmra.mxu0 %v286
    %v420 = vpop.f32.mrf.mxu0
    %v421 = vadd.f32 %v354, %v420
    %422 = vdwg.mxu0
    %423 = vmatpush.msra.mxu0 %v350
    %424 = vmatpush.msra.mxu0 %v348
    %425 = vmatpush.msra.mxu0 %v346
    %426 = vmatpush.msra.mxu0 %v344
    %427 = vmatpush.msra.mxu0 %v342
    %428 = vmatpush.msra.mxu0 %v340
    %429 = vmatpush.msra.mxu0 %v338
    %430 = vmatpush.msra.mxu0 %v336
    %431 = vmatpush.msra.mxu0 %v334
    %432 = vmatpush.msra.mxu0 %v332
    %433 = vmatpush.msra.mxu0 %v330
    %434 = vmatpush.msra.mxu0 %v328
    %435 = vmatpush.msra.mxu0 %v326
    %436 = vmatpush.msra.mxu0 %v324
    %437 = vmatpush.msra.mxu0 %v322
    %438 = vmatpush.msra.mxu0 %v320
    %439 = vmatmul.f32.gmra.mxu0 %v257
    %v440 = vpop.f32.mrf.mxu0
    %v441 = vadd.f32 %v376, %v440
    %442 = vmatmul.f32.gmra.mxu0 %v259
    %v443 = vpop.f32.mrf.mxu0
    %v444 = vadd.f32 %v379, %v443
    %445 = vmatmul.f32.gmra.mxu0 %v261
    %v446 = vpop.f32.mrf.mxu0
    %v447 = vadd.f32 %v382, %v446
    %448 = vmatmul.f32.gmra.mxu0 %v263
    %v449 = vpop.f32.mrf.mxu0
    %v450 = vadd.f32 %v385, %v449
    %451 = vmatmul.f32.gmra.mxu0 %v265
    %v452 = vpop.f32.mrf.mxu0
    %v453 = vadd.f32 %v388, %v452
    %454 = vmatmul.f32.gmra.mxu0 %v267
    %v455 = vpop.f32.mrf.mxu0
    %v456 = vadd.f32 %v391, %v455
    %457 = vmatmul.f32.gmra.mxu0 %v269
    %v458 = vpop.f32.mrf.mxu0
    %v459 = vadd.f32 %v394, %v458
    %460 = vmatmul.f32.gmra.mxu0 %v271
    %v461 = vpop.f32.mrf.mxu0
    %v462 = vadd.f32 %v397, %v461
    %463 = vmatmul.f32.gmra.mxu0 %v273
    %v464 = vpop.f32.mrf.mxu0
    %v465 = vadd.f32 %v400, %v464
    %466 = vmatmul.f32.gmra.mxu0 %v275
    %v467 = vpop.f32.mrf.mxu0
    %v468 = vadd.f32 %v403, %v467
    %469 = vmatmul.f32.gmra.mxu0 %v277
    %v470 = vpop.f32.mrf.mxu0
    %v471 = vadd.f32 %v406, %v470
    %472 = vmatmul.f32.gmra.mxu0 %v279
    %v473 = vpop.f32.mrf.mxu0
    %v474 = vadd.f32 %v409, %v473
    %475 = vmatmul.f32.gmra.mxu0 %v281
    %v476 = vpop.f32.mrf.mxu0
    %v477 = vadd.f32 %v412, %v476
    %478 = vmatmul.f32.gmra.mxu0 %v283
    %v479 = vpop.f32.mrf.mxu0
    %v480 = vadd.f32 %v415, %v479
    %481 = vmatmul.f32.gmra.mxu0 %v285
    %v482 = vpop.f32.mrf.mxu0
    %v483 = vadd.f32 %v418, %v482
    %484 = vmatmul.f32.gmra.mxu0 %v287
    %v485 = vpop.f32.mrf.mxu0
    %v486 = vadd.f32 %v421, %v485
    %487 = vdwg.mxu0
    %488 = vmatpush.msra.mxu0 %v319
    %489 = vmatpush.msra.mxu0 %v317
    %490 = vmatpush.msra.mxu0 %v315
    %491 = vmatpush.msra.mxu0 %v313
    %492 = vmatpush.msra.mxu0 %v311
    %493 = vmatpush.msra.mxu0 %v309
    %494 = vmatpush.msra.mxu0 %v307
    %495 = vmatpush.msra.mxu0 %v305
    %496 = vmatpush.msra.mxu0 %v303
    %497 = vmatpush.msra.mxu0 %v301
    %498 = vmatpush.msra.mxu0 %v299
    %499 = vmatpush.msra.mxu0 %v297
    %500 = vmatpush.msra.mxu0 %v295
    %501 = vmatpush.msra.mxu0 %v293
    %502 = vmatpush.msra.mxu0 %v291
    %503 = vmatpush.msra.mxu0 %v289
    %504 = vmatmul.f32.gmra.mxu0 %v256
    %v505 = vpop.f32.mrf.mxu0
    %v506 = vadd.f32 %v355, %v505
    %507 = vmatmul.f32.gmra.mxu0 %v258
    %v508 = vpop.f32.mrf.mxu0
    %v509 = vadd.f32 %v355, %v508
    %510 = vmatmul.f32.gmra.mxu0 %v260
    %v511 = vpop.f32.mrf.mxu0
    %v512 = vadd.f32 %v355, %v511
    %513 = vmatmul.f32.gmra.mxu0 %v262
    %v514 = vpop.f32.mrf.mxu0
    %v515 = vadd.f32 %v355, %v514
    %516 = vmatmul.f32.gmra.mxu0 %v264
    %v517 = vpop.f32.mrf.mxu0
    %v518 = vadd.f32 %v355, %v517
    %519 = vmatmul.f32.gmra.mxu0 %v266
    %v520 = vpop.f32.mrf.mxu0
    %v521 = vadd.f32 %v355, %v520
    %522 = vmatmul.f32.gmra.mxu0 %v268
    %v523 = vpop.f32.mrf.mxu0
    %v524 = vadd.f32 %v355, %v523
    %525 = vmatmul.f32.gmra.mxu0 %v270
    %v526 = vpop.f32.mrf.mxu0
    %v527 = vadd.f32 %v355, %v526
    %528 = vmatmul.f32.gmra.mxu0 %v272
    %v529 = vpop.f32.mrf.mxu0
    %v530 = vadd.f32 %v355, %v529
    %531 = vmatmul.f32.gmra.mxu0 %v274
    %v532 = vpop.f32.mrf.mxu0
    %v533 = vadd.f32 %v355, %v532
    %534 = vmatmul.f32.gmra.mxu0 %v276
    %v535 = vpop.f32.mrf.mxu0
    %v536 = vadd.f32 %v355, %v535
    %537 = vmatmul.f32.gmra.mxu0 %v278
    %v538 = vpop.f32.mrf.mxu0
    %v539 = vadd.f32 %v355, %v538
    %540 = vmatmul.f32.gmra.mxu0 %v280
    %v541 = vpop.f32.mrf.mxu0
    %v542 = vadd.f32 %v355, %v541
    %543 = vmatmul.f32.gmra.mxu0 %v282
    %v544 = vpop.f32.mrf.mxu0
    %v545 = vadd.f32 %v355, %v544
    %546 = vmatmul.f32.gmra.mxu0 %v284
    %v547 = vpop.f32.mrf.mxu0
    %v548 = vadd.f32 %v355, %v547
    %549 = vmatmul.f32.gmra.mxu0 %v286
    %v550 = vpop.f32.mrf.mxu0
    %v551 = vadd.f32 %v355, %v550
    %552 = vdwg.mxu0
    %553 = vmatpush.msra.mxu0 %v351
    %554 = vmatpush.msra.mxu0 %v349
    %555 = vmatpush.msra.mxu0 %v347
    %556 = vmatpush.msra.mxu0 %v345
    %557 = vmatpush.msra.mxu0 %v343
    %558 = vmatpush.msra.mxu0 %v341
    %559 = vmatpush.msra.mxu0 %v339
    %560 = vmatpush.msra.mxu0 %v337
    %561 = vmatpush.msra.mxu0 %v335
    %562 = vmatpush.msra.mxu0 %v333
    %563 = vmatpush.msra.mxu0 %v331
    %564 = vmatpush.msra.mxu0 %v329
    %565 = vmatpush.msra.mxu0 %v327
    %566 = vmatpush.msra.mxu0 %v325
    %567 = vmatpush.msra.mxu0 %v323
    %568 = vmatpush.msra.mxu0 %v321
    %569 = vmatmul.f32.gmra.mxu0 %v257
    %v570 = vpop.f32.mrf.mxu0
    %v571 = vadd.f32 %v506, %v570
    %572 = vmatmul.f32.gmra.mxu0 %v259
    %v573 = vpop.f32.mrf.mxu0
    %v574 = vadd.f32 %v509, %v573
    %575 = vmatmul.f32.gmra.mxu0 %v261
    %v576 = vpop.f32.mrf.mxu0
    %v577 = vadd.f32 %v512, %v576
    %578 = vmatmul.f32.gmra.mxu0 %v263
    %v579 = vpop.f32.mrf.mxu0
    %v580 = vadd.f32 %v515, %v579
    %581 = vmatmul.f32.gmra.mxu0 %v265
    %v582 = vpop.f32.mrf.mxu0
    %v583 = vadd.f32 %v518, %v582
    %584 = vmatmul.f32.gmra.mxu0 %v267
    %v585 = vpop.f32.mrf.mxu0
    %v586 = vadd.f32 %v521, %v585
    %587 = vmatmul.f32.gmra.mxu0 %v269
    %v588 = vpop.f32.mrf.mxu0
    %v589 = vadd.f32 %v524, %v588
    %590 = vmatmul.f32.gmra.mxu0 %v271
    %v591 = vpop.f32.mrf.mxu0
    %v592 = vadd.f32 %v527, %v591
    %593 = vmatmul.f32.gmra.mxu0 %v273
    %v594 = vpop.f32.mrf.mxu0
    %v595 = vadd.f32 %v530, %v594
    %596 = vmatmul.f32.gmra.mxu0 %v275
    %v597 = vpop.f32.mrf.mxu0
    %v598 = vadd.f32 %v533, %v597
    %599 = vmatmul.f32.gmra.mxu0 %v277
    %v600 = vpop.f32.mrf.mxu0
    %v601 = vadd.f32 %v536, %v600
    %602 = vmatmul.f32.gmra.mxu0 %v279
    %v603 = vpop.f32.mrf.mxu0
    %v604 = vadd.f32 %v539, %v603
    %605 = vmatmul.f32.gmra.mxu0 %v281
    %v606 = vpop.f32.mrf.mxu0
    %v607 = vadd.f32 %v542, %v606
    %608 = vmatmul.f32.gmra.mxu0 %v283
    %v609 = vpop.f32.mrf.mxu0
    %v610 = vadd.f32 %v545, %v609
    %611 = vmatmul.f32.gmra.mxu0 %v285
    %v612 = vpop.f32.mrf.mxu0
    %v613 = vadd.f32 %v548, %v612
    %614 = vmatmul.f32.gmra.mxu0 %v287
    %v615 = vpop.f32.mrf.mxu0
    %v616 = vadd.f32 %v551, %v615
    %617 = vdwg.mxu0
    %v618 = vmax.f32 %v441, 0.0
    %v619 = vmax.f32 %v571, 0.0
    %v620 = vmax.f32 %v444, 0.0
    %v621 = vmax.f32 %v574, 0.0
    %v622 = vmax.f32 %v447, 0.0
    %v623 = vmax.f32 %v577, 0.0
    %v624 = vmax.f32 %v450, 0.0
    %v625 = vmax.f32 %v580, 0.0
    %v626 = vmax.f32 %v453, 0.0
    %v627 = vmax.f32 %v583, 0.0
    %v628 = vmax.f32 %v456, 0.0
    %v629 = vmax.f32 %v586, 0.0
    %v630 = vmax.f32 %v459, 0.0
    %v631 = vmax.f32 %v589, 0.0
    %v632 = vmax.f32 %v462, 0.0
    %v633 = vmax.f32 %v592, 0.0
    %v634 = vmax.f32 %v465, 0.0
    %v635 = vmax.f32 %v595, 0.0
    %v636 = vmax.f32 %v468, 0.0
    %v637 = vmax.f32 %v598, 0.0
    %v638 = vmax.f32 %v471, 0.0
    %v639 = vmax.f32 %v601, 0.0
    %v640 = vmax.f32 %v474, 0.0
    %v641 = vmax.f32 %v604, 0.0
    %v642 = vmax.f32 %v477, 0.0
    %v643 = vmax.f32 %v607, 0.0
    %v644 = vmax.f32 %v480, 0.0
    %v645 = vmax.f32 %v610, 0.0
    %v646 = vmax.f32 %v483, 0.0
    %v647 = vmax.f32 %v613, 0.0
    %v648 = vmax.f32 %v486, 0.0
    %v649 = vmax.f32 %v616, 0.0
    %v650 = vld [vmem:[%s5] sm:$0x3]
    %v652 = vperm.slane %v650, 0
    %v653 = vperm.slane %v650, 1
    %v656 = vmul.f32 %v618, %v652
    %v657 = vmul.f32 %v619, %v653
    %v658 = vmul.f32 %v620, %v652
    %v659 = vmul.f32 %v621, %v653
    %v660 = vmul.f32 %v622, %v652
    %v661 = vmul.f32 %v623, %v653
    %v662 = vmul.f32 %v624, %v652
    %v663 = vmul.f32 %v625, %v653
    %v664 = vmul.f32 %v626, %v652
    %v665 = vmul.f32 %v627, %v653
    %v666 = vmul.f32 %v628, %v652
    %v667 = vmul.f32 %v629, %v653
    %v668 = vmul.f32 %v630, %v652
    %v669 = vmul.f32 %v631, %v653
    %v670 = vmul.f32 %v632, %v652
    %v671 = vmul.f32 %v633, %v653
    %v672 = vmul.f32 %v634, %v652
    %v673 = vmul.f32 %v635, %v653
    %v674 = vmul.f32 %v636, %v652
    %v675 = vmul.f32 %v637, %v653
    %v676 = vmul.f32 %v638, %v652
    %v677 = vmul.f32 %v639, %v653
    %v678 = vmul.f32 %v640, %v652
    %v679 = vmul.f32 %v641, %v653
    %v680 = vmul.f32 %v642, %v652
    %v681 = vmul.f32 %v643, %v653
    %v682 = vmul.f32 %v644, %v652
    %v683 = vmul.f32 %v645, %v653
    %v684 = vmul.f32 %v646, %v652
    %v685 = vmul.f32 %v647, %v653
    %v686 = vmul.f32 %v648, %v652
    %v687 = vmul.f32 %v649, %v653
    %v688 = vadd.f32 %v656, %v657
    %689 = vadd.xlane.f32.xlu0 %v688
    %v690 = vpop.xlane.xlu0 %689
    %v691 = vadd.f32 %v658, %v659
    %692 = vadd.xlane.f32.xlu0 %v691
    %v693 = vpop.xlane.xlu0 %692
    %v694 = vadd.f32 %v660, %v661
    %695 = vadd.xlane.f32.xlu0 %v694
    %v696 = vpop.xlane.xlu0 %695
    %v697 = vadd.f32 %v662, %v663
    %698 = vadd.xlane.f32.xlu0 %v697
    %v699 = vpop.xlane.xlu0 %698
    %v700 = vadd.f32 %v664, %v665
    %701 = vadd.xlane.f32.xlu0 %v700
    %v702 = vpop.xlane.xlu0 %701
    %v703 = vadd.f32 %v666, %v667
    %704 = vadd.xlane.f32.xlu0 %v703
    %v705 = vpop.xlane.xlu0 %704
    %v706 = vadd.f32 %v668, %v669
    %707 = vadd.xlane.f32.xlu0 %v706
    %v708 = vpop.xlane.xlu0 %707
    %v709 = vadd.f32 %v670, %v671
    %710 = vadd.xlane.f32.xlu0 %v709
    %v711 = vpop.xlane.xlu0 %710
    %v712 = vadd.f32 %v672, %v673
    %713 = vadd.xlane.f32.xlu0 %v712
    %v714 = vpop.xlane.xlu0 %713
    %v715 = vadd.f32 %v674, %v675
    %716 = vadd.xlane.f32.xlu0 %v715
    %v717 = vpop.xlane.xlu0 %716
    %v718 = vadd.f32 %v676, %v677
    %719 = vadd.xlane.f32.xlu0 %v718
    %v720 = vpop.xlane.xlu0 %719
    %v721 = vadd.f32 %v678, %v679
    %722 = vadd.xlane.f32.xlu0 %v721
    %v723 = vpop.xlane.xlu0 %722
    %v724 = vadd.f32 %v680, %v681
    %725 = vadd.xlane.f32.xlu0 %v724
    %v726 = vpop.xlane.xlu0 %725
    %v727 = vadd.f32 %v682, %v683
    %728 = vadd.xlane.f32.xlu0 %v727
    %v729 = vpop.xlane.xlu0 %728
    %v730 = vadd.f32 %v684, %v685
    %731 = vadd.xlane.f32.xlu0 %v730
    %v732 = vpop.xlane.xlu0 %731
    %v733 = vadd.f32 %v686, %v687
    %734 = vadd.xlane.f32.xlu0 %v733
    %v735 = vpop.xlane.xlu0 %734
    %v736 = vld [vmem:[#allocation2] sm:$0x1]
    %738 = vset.pattern.permute.xlu0 0
    %739 = vperm.xlu0 %738, %v736
    %v740 = vpop.permute.xlu0 %739
    %v742 = vperm.slane %v740, 0
    %v743 = vadd.f32 %v690, %v742
    %v744 = vadd.f32 %v693, %v742
    %v745 = vadd.f32 %v696, %v742
    %v746 = vadd.f32 %v699, %v742
    %v747 = vadd.f32 %v702, %v742
    %v748 = vadd.f32 %v705, %v742
    %v749 = vadd.f32 %v708, %v742
    %v750 = vadd.f32 %v711, %v742
    %v751 = vadd.f32 %v714, %v742
    %v752 = vadd.f32 %v717, %v742
    %v753 = vadd.f32 %v720, %v742
    %v754 = vadd.f32 %v723, %v742
    %v755 = vadd.f32 %v726, %v742
    %v756 = vadd.f32 %v729, %v742
    %v757 = vadd.f32 %v732, %v742
    %v758 = vadd.f32 %v735, %v742
    %v775 = vlaneseq
    %v776 = vand.u32 %v775, 127
    %v777 = vperm.slane %v743, %v776
    %v778 = vadd.s32 %v776, 4294967288
    %v779 = vperm.slane %v744, %v778
    %vm780 = vcmask 130112
    %v781 = vsel %vm780, %v779, %v777
    %v782 = vadd.s32 %v776, 4294967280
    %v783 = vperm.slane %v745, %v782
    %vm784 = vcmask 195712
    %v785 = vsel %vm784, %v783, %v781
    %v786 = vadd.s32 %v776, 4294967272
    %v787 = vperm.slane %v746, %v786
    %vm788 = vcmask 261312
    %v789 = vsel %vm788, %v787, %v785
    %v790 = vadd.s32 %v776, 4294967264
    %v791 = vperm.slane %v747, %v790
    %vm792 = vcmask 326912
    %v793 = vsel %vm792, %v791, %v789
    %v794 = vadd.s32 %v776, 4294967256
    %v795 = vperm.slane %v748, %v794
    %vm796 = vcmask 392512
    %v797 = vsel %vm796, %v795, %v793
    %v798 = vadd.s32 %v776, 4294967248
    %v799 = vperm.slane %v749, %v798
    %vm800 = vcmask 458112
    %v801 = vsel %vm800, %v799, %v797
    %v802 = vadd.s32 %v776, 4294967240
    %v803 = vperm.slane %v750, %v802
    %vm804 = vcmask 523712
    %v805 = vsel %vm804, %v803, %v801
    %v806 = vadd.s32 %v776, 4294967232
    %v807 = vperm.slane %v751, %v806
    %vm808 = vcmask 589312
    %v809 = vsel %vm808, %v807, %v805
    %v810 = vadd.s32 %v776, 4294967224
    %v811 = vperm.slane %v752, %v810
    %vm812 = vcmask 654912
    %v813 = vsel %vm812, %v811, %v809
    %v814 = vadd.s32 %v776, 4294967216
    %v815 = vperm.slane %v753, %v814
    %vm816 = vcmask 720512
    %v817 = vsel %vm816, %v815, %v813
    %v818 = vadd.s32 %v776, 4294967208
    %v819 = vperm.slane %v754, %v818
    %vm820 = vcmask 786112
    %v821 = vsel %vm820, %v819, %v817
    %v822 = vadd.s32 %v776, 4294967200
    %v823 = vperm.slane %v755, %v822
    %vm824 = vcmask 851712
    %v825 = vsel %vm824, %v823, %v821
    %v826 = vadd.s32 %v776, 4294967192
    %v827 = vperm.slane %v756, %v826
    %vm828 = vcmask 917312
    %v829 = vsel %vm828, %v827, %v825
    %v830 = vadd.s32 %v776, 4294967184
    %v831 = vperm.slane %v757, %v830
    %vm832 = vcmask 982912
    %v833 = vsel %vm832, %v831, %v829
    %v834 = vadd.s32 %v776, 4294967176
    %v835 = vperm.slane %v758, %v834
    %vm836 = vcmask 1048512
    %v837 = vsel %vm836, %v835, %v833
    %839 = vst [vmem:[#allocation6] sm:$0x1] %v837
    // Predicated region
    $region34: #{tpu_custom_call.1} parent=1 // pred_check
      _
    $region35: #{tpu_custom_call.1} parent=1 // pred_check_branch
      %841 = sbr.rel (0) target = $region37
    $region36: #{tpu_custom_call.1} parent=1 // pred_region
      %843 = vsyncadd [#allocation5], 0
      %s845 = sshll.u32 [#allocation6], 4
      %s846 = int_to_ptr.vmem [resolvable:$true] %s845
      %s847 = sshll.u32 %s7, 4
      %s848 = int_to_ptr.hbm [resolvable:$true] %s847
      %850 = dma.vmem_to_hbm [thread:$0]  %s846, 16, %s848, [#allocation5]
    $region37: #{tpu_custom_call.1} parent=1 // pred_fallthru
      _
    // Predicated region
    $region38: #{tpu_custom_call.1} parent=1 // pred_check
      _
    $region39: #{tpu_custom_call.1} parent=1 // pred_check_branch
      %852 = sbr.rel (0) target = $region41
    $region40: #{tpu_custom_call.1} parent=1 // pred_region
      %854 = dma.done [#allocation5], 16
    $region41: #{tpu_custom_call.1} parent=1 // pred_fallthru
      _
    %855 = vsyncpa [#allocation4], 1
    %856 = vsyncpa [#allocation5], 1

</llo_original>
